<compile_context>
chip_gen: v6e
topology: v6e:2x2x1
jax: 0.10.0
libtpu: 0.0.40
codegen_flags: <defaults>
</compile_context>

<pallas_src>
import math
import jax
import jax.numpy as jnp
from jax.experimental import pallas as pl
from jax.experimental.pallas import tpu as pltpu

# ---- constants mirroring the PyTorch module ----
IMG = 8
N_IN = IMG * IMG          # 64
N_MID = 32
N_OUT = 10
NUM_LAYER = 2             # Net(num_layer=2, ...)
NUM_SAMPLE = 3            # MC samples per forward
BATCH = 4

PI_MIX = 0.5
SIGMA1 = 1.0              # exp(-0)
SIGMA2 = math.exp(-6.0)
LOG_SQRT_2PI = 0.5 * math.log(2.0 * math.pi)
LANE = 128

# scale-mixture prior rearranged:
#   log N(w;0,s1)*pi + N(w;0,s2)*(1-pi)
#     = -LOG_SQRT_2PI - w^2/(2 s1^2) + log(A + B * exp(-D * w^2))
A_MIX = PI_MIX / SIGMA1
B_MIX = (1.0 - PI_MIX) / SIGMA2
D_MIX = 0.5 * (1.0 / SIGMA2 ** 2 - 1.0 / SIGMA1 ** 2)

# total number of variational parameters and lane padding (static)
P_TOTAL = (N_IN * N_MID + N_MID) + NUM_LAYER * (N_MID * N_MID + N_MID) \
    + (N_MID * N_OUT + N_OUT)
R_ROWS = -(-P_TOTAL // LANE)
PAD = R_ROWS * LANE - P_TOTAL
# padded lanes carry w=0, mu=0, inv2var=0: their only spurious contribution is
# -log_p(0) per pad element per sample; cancel it with this trace-time constant.
PAD_CORR = PAD * (-LOG_SQRT_2PI + math.log(A_MIX + B_MIX))


# ---------------------------------------------------------------------------
# Fused kernel: block-diagonal MC-averaged MLP forward + KL + final loss
# ---------------------------------------------------------------------------
def fused_kernel(cq_ref, x_ref, y_ref, w1_ref, b1_ref, wm_ref, bm_ref,
                 w3_ref, b3_ref, w_ref, mu_ref, i2v_ref, out_ref):
    # ----- MLP forward: all MC draws folded into one block-diag matmul chain.
    h = jnp.dot(x_ref[...], w1_ref[...],
                preferred_element_type=jnp.float32) + b1_ref[...]
    h = jnp.maximum(h, 0.0)
    for l in range(NUM_LAYER):                                 # static unroll
        h = jnp.dot(h, wm_ref[l],
                    preferred_element_type=jnp.float32) + bm_ref[l]
        h = jnp.maximum(h, 0.0)
    logits = jnp.dot(h, w3_ref[...],
                     preferred_element_type=jnp.float32) + b3_ref[...]   # (B, S*10)

    # per-sample log_softmax over each group of N_OUT lanes (mask based, no
    # lane slicing); the mean over MC samples is folded into the one-hot dot.
    lane = jax.lax.broadcasted_iota(jnp.int32, logits.shape, 1)
    norm = jnp.zeros_like(logits)
    for s in range(NUM_SAMPLE):                                # static unroll
        mask = (lane >= s * N_OUT) & (lane < (s + 1) * N_OUT)
        zs = jnp.where(mask, logits, -1e30)
        m = jnp.max(zs, axis=1, keepdims=True)
        ssum = jnp.sum(jnp.where(mask, jnp.exp(zs - m), 0.0),
                       axis=1, keepdims=True)
        norm = norm + jnp.where(mask, m + jnp.log(ssum), 0.0)
    logprobs = logits - norm                                   # (B, S*10)
    nll = -(1.0 / NUM_SAMPLE) * jnp.sum(logprobs * y_ref[...],
                                        axis=1, keepdims=True)  # (B, 1)

    # ----- KL: mean over MC draws of sum(log_q - log_p).
    # log_q's (-log sqrt(2pi) - log sigma) part is the hoisted scalar cq;
    # per-element work is one multiply-add (posterior) + one exp + one log
    # (prior).  Accumulate per-lane, reduce to a scalar once.
    mu = mu_ref[...]
    i2v = i2v_ref[...]
    kacc = jnp.zeros_like(mu)
    for s in range(NUM_SAMPLE):                                # static unroll
        w = w_ref[s]
        wsq = w * w
        log_p_e = (-LOG_SQRT_2PI - 0.5 * wsq
                   + jnp.log(A_MIX + B_MIX * jnp.exp(-D_MIX * wsq)))
        kacc = kacc + (-(w - mu) ** 2 * i2v - log_p_e)
    kl = jnp.sum(kacc) * (1.0 / NUM_SAMPLE) + cq_ref[0] + PAD_CORR

    out_ref[...] = nll + kl


# ---------------------------------------------------------------------------
# Wrapper: single no-grid pallas_call, everything resident in VMEM
# ---------------------------------------------------------------------------
@jax.jit
def bbb_loss(cq, x_rep, y_rep, w1_bd, b1c, wm_bd, bmc, w3_bd, b3c,
             w_pad, mu_pad, i2v_pad):
    out = pl.pallas_call(
        fused_kernel,
        out_shape=jax.ShapeDtypeStruct((BATCH, 1), jnp.float32),
        in_specs=[pl.BlockSpec(memory_space=pltpu.MemorySpace.SMEM)]
                 + [pl.BlockSpec(memory_space=pltpu.MemorySpace.VMEM)] * 11,
        out_specs=pl.BlockSpec(memory_space=pltpu.MemorySpace.VMEM),
    )(cq, x_rep, y_rep, w1_bd, b1c, wm_bd, bmc, w3_bd, b3c,
      w_pad, mu_pad, i2v_pad)
    return out[:, 0]


# ---------------------------------------------------------------------------
# Parameter init / weight sampling / packing (glue, deterministic)
# ---------------------------------------------------------------------------
def init_layer(key, fan_in, fan_out):
    k1, k2, k3, k4 = jax.random.split(key, 4)
    return dict(
        w_mu=jax.random.uniform(k1, (fan_in, fan_out), jnp.float32, -0.2, 0.2),
        w_rho=jax.random.uniform(k2, (fan_in, fan_out), jnp.float32, -5.0, -4.0),
        b_mu=jax.random.uniform(k3, (fan_out,), jnp.float32, -0.2, 0.2),
        b_rho=jax.random.uniform(k4, (fan_out,), jnp.float32, -5.0, -4.0),
    )


def sample_layer(key, layer, n_samples):
    # TODO(synk): torch.distributions.Normal(0,1).sample() uses torch RNG; we
    # reproduce the reparameterized sampling with jax.random instead.
    kw, kb = jax.random.split(key)
    w_sig = jnp.log1p(jnp.exp(layer['w_rho']))
    b_sig = jnp.log1p(jnp.exp(layer['b_rho']))
    w = layer['w_mu'][None] + w_sig[None] * jax.random.normal(
        kw, (n_samples,) + layer['w_mu'].shape, jnp.float32)
    b = layer['b_mu'][None] + b_sig[None] * jax.random.normal(
        kb, (n_samples,) + layer['b_mu'].shape, jnp.float32)
    return w, b, w_sig, b_sig


def block_diag(*mats):
    rows = sum(m.shape[0] for m in mats)
    cols = sum(m.shape[1] for m in mats)
    out = jnp.zeros((rows, cols), mats[0].dtype)
    r = c = 0
    for m in mats:
        out = out.at[r:r + m.shape[0], c:c + m.shape[1]].set(m)
        r += m.shape[0]
        c += m.shape[1]
    return out


if __name__ == "__main__":
    key = jax.random.PRNGKey(0)
    k_x, k_t, k_p, k_s = jax.random.split(key, 4)

    # layout: NCHW image input, flattened to (B, 64) like x.view(-1, n_in)
    x = jax.random.normal(k_x, (BATCH, 1, IMG, IMG), jnp.float32)
    x_flat = x.reshape(BATCH, N_IN)
    target = jax.random.randint(k_t, (BATCH,), 0, N_OUT)
    onehot = jax.nn.one_hot(target, N_OUT, dtype=jnp.float32)

    pkeys = jax.random.split(k_p, NUM_LAYER + 2)
    layers = [init_layer(pkeys[0], N_IN, N_MID)]
    layers += [init_layer(pkeys[i + 1], N_MID, N_MID) for i in range(NUM_LAYER)]
    layers += [init_layer(pkeys[-1], N_MID, N_OUT)]

    skeys = jax.random.split(k_s, NUM_LAYER + 2)
    samples = [sample_layer(skeys[i], layers[i], NUM_SAMPLE)
               for i in range(len(layers))]

    w1_s, b1_s = samples[0][0], samples[0][1]                     # (S,64,32) (S,32)
    wm_s = jnp.stack([samples[1 + l][0] for l in range(NUM_LAYER)], axis=1)
    bm_s = jnp.stack([samples[1 + l][1] for l in range(NUM_LAYER)], axis=1)
    w3_s, b3_s = samples[-1][0], samples[-1][1]                   # (S,32,10) (S,10)

    # ---- block-diagonal packing: fold the S MC samples into single matmuls ----
    x_rep = jnp.tile(x_flat, (1, NUM_SAMPLE))                     # (B, S*64)
    y_rep = jnp.tile(onehot, (1, NUM_SAMPLE))                     # (B, S*10)
    w1_bd = block_diag(*[w1_s[s] for s in range(NUM_SAMPLE)])     # (S*64, S*32)
    b1c = jnp.concatenate([b1_s[s] for s in range(NUM_SAMPLE)]).reshape(1, -1)
    wm_bd = jnp.stack([block_diag(*[wm_s[s, l] for s in range(NUM_SAMPLE)])
                       for l in range(NUM_LAYER)])                # (L, S*32, S*32)
    bmc = jnp.stack([jnp.concatenate([bm_s[s, l] for s in range(NUM_SAMPLE)]
                                     ).reshape(1, -1)
                     for l in range(NUM_LAYER)])                  # (L, 1, S*32)
    w3_bd = block_diag(*[w3_s[s] for s in range(NUM_SAMPLE)])     # (S*32, S*10)
    b3c = jnp.concatenate([b3_s[s] for s in range(NUM_SAMPLE)]).reshape(1, -1)

    # ---- flatten sampled params + posterior stats for the KL term ----
    w_parts, mu_parts, sig_parts = [], [], []
    for layer, (w, b, w_sig, b_sig) in zip(layers, samples):
        w_parts += [w.reshape(NUM_SAMPLE, -1), b.reshape(NUM_SAMPLE, -1)]
        mu_parts += [layer['w_mu'].reshape(-1), layer['b_mu'].reshape(-1)]
        sig_parts += [w_sig.reshape(-1), b_sig.reshape(-1)]
    w_all = jnp.concatenate(w_parts, axis=1)                      # (S, P)
    mu_all = jnp.concatenate(mu_parts)                            # (P,)
    sig_all = jnp.concatenate(sig_parts)                          # (P,)
    assert int(mu_all.shape[0]) == P_TOTAL

    w_pad = jnp.pad(w_all, ((0, 0), (0, PAD))).reshape(NUM_SAMPLE, R_ROWS, LANE)
    mu_pad = jnp.pad(mu_all, (0, PAD)).reshape(R_ROWS, LANE)
    i2v_pad = jnp.pad(1.0 / (2.0 * sig_all ** 2), (0, PAD)).reshape(R_ROWS, LANE)
    # hoisted constant part of log_q: sum_j (-log sqrt(2pi) - log sigma_j)
    cq = jnp.sum(-LOG_SQRT_2PI - jnp.log(sig_all)).reshape(1).astype(jnp.float32)

    loss = bbb_loss(cq, x_rep, y_rep, w1_bd, b1c, wm_bd, bmc, w3_bd, b3c,
                    w_pad, mu_pad, i2v_pad)
    loss = jax.block_until_ready(loss)

    # ---- pure-JAX reference (original formulation, plain XLA) ----
    outs, kls = [], []
    for s in range(NUM_SAMPLE):
        h = jax.nn.relu(x_flat @ w1_s[s] + b1_s[s])
        for l in range(NUM_LAYER):
            h = jax.nn.relu(h @ wm_s[s, l] + bm_s[s, l])
        logits = h @ w3_s[s] + b3_s[s]
        outs.append(jax.nn.log_softmax(logits, axis=1))
        w = w_all[s]
        log_q = jnp.sum(-LOG_SQRT_2PI - jnp.log(sig_all)
                        - (w - mu_all) ** 2 / (2.0 * sig_all ** 2))
        p1 = jnp.exp(-LOG_SQRT_2PI - math.log(SIGMA1) - w ** 2 / (2.0 * SIGMA1 ** 2))
        p2 = jnp.exp(-LOG_SQRT_2PI - math.log(SIGMA2) - w ** 2 / (2.0 * SIGMA2 ** 2))
        log_p = jnp.sum(jnp.log(PI_MIX * p1 + (1.0 - PI_MIX) * p2))
        kls.append(log_q - log_p)
    out_mean = jnp.stack(outs).mean(0)
    kl_ref = jnp.stack(kls).mean()
    nll_ref = -jnp.take_along_axis(out_mean, target[:, None], axis=1)[:, 0]
    loss_ref = jax.block_until_ready(kl_ref + nll_ref)

    assert loss.shape == (BATCH,)
    assert jnp.allclose(loss, loss_ref, rtol=3e-4, atol=1e-2), (loss, loss_ref)
    print("KERNEL_OK")
</pallas_src>

<mosaic_0001>
module attributes {stable_mosaic.version = 11 : i64} {
  func.func @fused_kernel(%arg0: memref<1xf32, #tpu.memory_space<smem>>, %arg1: memref<4x192xf32, #tpu.memory_space<vmem>>, %arg2: memref<4x30xf32, #tpu.memory_space<vmem>>, %arg3: memref<192x96xf32, #tpu.memory_space<vmem>>, %arg4: memref<1x96xf32, #tpu.memory_space<vmem>>, %arg5: memref<2x96x96xf32, #tpu.memory_space<vmem>>, %arg6: memref<2x1x96xf32, #tpu.memory_space<vmem>>, %arg7: memref<96x30xf32, #tpu.memory_space<vmem>>, %arg8: memref<1x30xf32, #tpu.memory_space<vmem>>, %arg9: memref<3x36x128xf32, #tpu.memory_space<vmem>>, %arg10: memref<36x128xf32, #tpu.memory_space<vmem>>, %arg11: memref<36x128xf32, #tpu.memory_space<vmem>>, %arg12: memref<4x1xf32, #tpu.memory_space<vmem>>) attributes {dimension_semantics = [], scalar_prefetch = 0 : i64, scratch_operands = 0 : i64, tpu.core_type = #tpu.core_type<tc>} {
    %c0 = arith.constant 0 : index
    %c0_0 = arith.constant 0 : index
    %0 = vector.load %arg1[%c0, %c0_0] : memref<4x192xf32, #tpu.memory_space<vmem>>, vector<4x192xf32>
    %c0_1 = arith.constant 0 : index
    %c0_2 = arith.constant 0 : index
    %1 = vector.load %arg3[%c0_1, %c0_2] : memref<192x96xf32, #tpu.memory_space<vmem>>, vector<192x96xf32>
    %cst = arith.constant dense<0.000000e+00> : vector<4x96xf32>
    %2 = tpu.matmul %0, %1, %cst {dimension_numbers = #tpu.dot_dimension_numbers<[1], [0], [0], [1], [0, 0, 1, 1], [], []>} : vector<4x192xf32>, vector<192x96xf32>, vector<4x96xf32> -> vector<4x96xf32>
    %c0_3 = arith.constant 0 : index
    %c0_4 = arith.constant 0 : index
    %3 = vector.load %arg4[%c0_3, %c0_4] : memref<1x96xf32, #tpu.memory_space<vmem>>, vector<1x96xf32>
    %4 = vector.broadcast %3 : vector<1x96xf32> to vector<4x96xf32>
    %5 = arith.addf %2, %4 : vector<4x96xf32>
    %cst_5 = arith.constant 0.000000e+00 : f32
    %6 = vector.broadcast %cst_5 : f32 to vector<4x96xf32>
    %7 = arith.maximumf %5, %6 : vector<4x96xf32>
    %c0_6 = arith.constant 0 : index
    %c0_7 = arith.constant 0 : index
    %c0_8 = arith.constant 0 : index
    %8 = vector.load %arg5[%c0_6, %c0_7, %c0_8] : memref<2x96x96xf32, #tpu.memory_space<vmem>>, vector<1x96x96xf32>
    %9 = vector.shape_cast %8 : vector<1x96x96xf32> to vector<96x96xf32>
    %cst_9 = arith.constant dense<0.000000e+00> : vector<4x96xf32>
    %10 = tpu.matmul %7, %9, %cst_9 {dimension_numbers = #tpu.dot_dimension_numbers<[1], [0], [0], [1], [0, 0, 1, 1], [], []>} : vector<4x96xf32>, vector<96x96xf32>, vector<4x96xf32> -> vector<4x96xf32>
    %c0_10 = arith.constant 0 : index
    %c0_11 = arith.constant 0 : index
    %c0_12 = arith.constant 0 : index
    %11 = vector.load %arg6[%c0_10, %c0_11, %c0_12] : memref<2x1x96xf32, #tpu.memory_space<vmem>>, vector<1x1x96xf32>
    %12 = vector.shape_cast %11 : vector<1x1x96xf32> to vector<1x96xf32>
    %13 = vector.broadcast %12 : vector<1x96xf32> to vector<4x96xf32>
    %14 = arith.addf %10, %13 : vector<4x96xf32>
    %cst_13 = arith.constant 0.000000e+00 : f32
    %15 = vector.broadcast %cst_13 : f32 to vector<4x96xf32>
    %16 = arith.maximumf %14, %15 : vector<4x96xf32>
    %c1 = arith.constant 1 : index
    %c0_14 = arith.constant 0 : index
    %c0_15 = arith.constant 0 : index
    %17 = vector.load %arg5[%c1, %c0_14, %c0_15] : memref<2x96x96xf32, #tpu.memory_space<vmem>>, vector<1x96x96xf32>
    %18 = vector.shape_cast %17 : vector<1x96x96xf32> to vector<96x96xf32>
    %cst_16 = arith.constant dense<0.000000e+00> : vector<4x96xf32>
    %19 = tpu.matmul %16, %18, %cst_16 {dimension_numbers = #tpu.dot_dimension_numbers<[1], [0], [0], [1], [0, 0, 1, 1], [], []>} : vector<4x96xf32>, vector<96x96xf32>, vector<4x96xf32> -> vector<4x96xf32>
    %c1_17 = arith.constant 1 : index
    %c0_18 = arith.constant 0 : index
    %c0_19 = arith.constant 0 : index
    %20 = vector.load %arg6[%c1_17, %c0_18, %c0_19] : memref<2x1x96xf32, #tpu.memory_space<vmem>>, vector<1x1x96xf32>
    %21 = vector.shape_cast %20 : vector<1x1x96xf32> to vector<1x96xf32>
    %22 = vector.broadcast %21 : vector<1x96xf32> to vector<4x96xf32>
    %23 = arith.addf %19, %22 : vector<4x96xf32>
    %cst_20 = arith.constant 0.000000e+00 : f32
    %24 = vector.broadcast %cst_20 : f32 to vector<4x96xf32>
    %25 = arith.maximumf %23, %24 : vector<4x96xf32>
    %c0_21 = arith.constant 0 : index
    %c0_22 = arith.constant 0 : index
    %26 = vector.load %arg7[%c0_21, %c0_22] : memref<96x30xf32, #tpu.memory_space<vmem>>, vector<96x30xf32>
    %cst_23 = arith.constant dense<0.000000e+00> : vector<4x30xf32>
    %27 = tpu.matmul %25, %26, %cst_23 {dimension_numbers = #tpu.dot_dimension_numbers<[1], [0], [0], [1], [0, 0, 1, 1], [], []>} : vector<4x96xf32>, vector<96x30xf32>, vector<4x30xf32> -> vector<4x30xf32>
    %c0_24 = arith.constant 0 : index
    %c0_25 = arith.constant 0 : index
    %28 = vector.load %arg8[%c0_24, %c0_25] : memref<1x30xf32, #tpu.memory_space<vmem>>, vector<1x30xf32>
    %29 = vector.broadcast %28 : vector<1x30xf32> to vector<4x30xf32>
    %30 = arith.addf %27, %29 : vector<4x30xf32>
    %31 = tpu.iota {dimensions = array<i32: 1>} : vector<4x30xi32>
    %cst_26 = arith.constant 0.000000e+00 : f32
    %32 = vector.broadcast %cst_26 : f32 to vector<4x30xf32>
    %c0_i32 = arith.constant 0 : i32
    %33 = vector.broadcast %c0_i32 : i32 to vector<4x30xi32>
    %34 = arith.cmpi sge, %31, %33 : vector<4x30xi32>
    %c10_i32 = arith.constant 10 : i32
    %35 = vector.broadcast %c10_i32 : i32 to vector<4x30xi32>
    %36 = arith.cmpi slt, %31, %35 : vector<4x30xi32>
    %37 = arith.andi %34, %36 : vector<4x30xi1>
    %cst_27 = arith.constant -1.000000e+30 : f32
    %38 = vector.broadcast %cst_27 : f32 to vector<4x30xf32>
    %39 = arith.select %37, %30, %38 : vector<4x30xi1>, vector<4x30xf32>
    %cst_28 = arith.constant dense<0xFF800000> : vector<4xf32>
    %40 = vector.multi_reduction <maximumf>, %39, %cst_28 [1] : vector<4x30xf32> to vector<4xf32>
    %41 = vector.shape_cast %40 : vector<4xf32> to vector<4x1xf32>
    %42 = vector.broadcast %41 : vector<4x1xf32> to vector<4x30xf32>
    %43 = arith.subf %39, %42 : vector<4x30xf32>
    %44 = math.exp %43 : vector<4x30xf32>
    %cst_29 = arith.constant 0.000000e+00 : f32
    %45 = vector.broadcast %cst_29 : f32 to vector<4x30xf32>
    %46 = arith.select %37, %44, %45 : vector<4x30xi1>, vector<4x30xf32>
    %cst_30 = arith.constant dense<0.000000e+00> : vector<4xf32>
    %47 = vector.multi_reduction <add>, %46, %cst_30 [1] : vector<4x30xf32> to vector<4xf32>
    %48 = vector.shape_cast %47 : vector<4xf32> to vector<4x1xf32>
    %49 = math.log %48 : vector<4x1xf32>
    %50 = arith.addf %41, %49 : vector<4x1xf32>
    %cst_31 = arith.constant 0.000000e+00 : f32
    %51 = vector.shape_cast %50 : vector<4x1xf32> to vector<4x1xf32>
    %52 = vector.broadcast %51 : vector<4x1xf32> to vector<4x30xf32>
    %53 = vector.broadcast %cst_31 : f32 to vector<4x30xf32>
    %54 = arith.select %37, %52, %53 : vector<4x30xi1>, vector<4x30xf32>
    %55 = arith.addf %32, %54 : vector<4x30xf32>
    %c10_i32_32 = arith.constant 10 : i32
    %56 = vector.broadcast %c10_i32_32 : i32 to vector<4x30xi32>
    %57 = arith.cmpi sge, %31, %56 : vector<4x30xi32>
    %c20_i32 = arith.constant 20 : i32
    %58 = vector.broadcast %c20_i32 : i32 to vector<4x30xi32>
    %59 = arith.cmpi slt, %31, %58 : vector<4x30xi32>
    %60 = arith.andi %57, %59 : vector<4x30xi1>
    %cst_33 = arith.constant -1.000000e+30 : f32
    %61 = vector.broadcast %cst_33 : f32 to vector<4x30xf32>
    %62 = arith.select %60, %30, %61 : vector<4x30xi1>, vector<4x30xf32>
    %cst_34 = arith.constant dense<0xFF800000> : vector<4xf32>
    %63 = vector.multi_reduction <maximumf>, %62, %cst_34 [1] : vector<4x30xf32> to vector<4xf32>
    %64 = vector.shape_cast %63 : vector<4xf32> to vector<4x1xf32>
    %65 = vector.broadcast %64 : vector<4x1xf32> to vector<4x30xf32>
    %66 = arith.subf %62, %65 : vector<4x30xf32>
    %67 = math.exp %66 : vector<4x30xf32>
    %cst_35 = arith.constant 0.000000e+00 : f32
    %68 = vector.broadcast %cst_35 : f32 to vector<4x30xf32>
    %69 = arith.select %60, %67, %68 : vector<4x30xi1>, vector<4x30xf32>
    %cst_36 = arith.constant dense<0.000000e+00> : vector<4xf32>
    %70 = vector.multi_reduction <add>, %69, %cst_36 [1] : vector<4x30xf32> to vector<4xf32>
    %71 = vector.shape_cast %70 : vector<4xf32> to vector<4x1xf32>
    %72 = math.log %71 : vector<4x1xf32>
    %73 = arith.addf %64, %72 : vector<4x1xf32>
    %cst_37 = arith.constant 0.000000e+00 : f32
    %74 = vector.shape_cast %73 : vector<4x1xf32> to vector<4x1xf32>
    %75 = vector.broadcast %74 : vector<4x1xf32> to vector<4x30xf32>
    %76 = vector.broadcast %cst_37 : f32 to vector<4x30xf32>
    %77 = arith.select %60, %75, %76 : vector<4x30xi1>, vector<4x30xf32>
    %78 = arith.addf %55, %77 : vector<4x30xf32>
    %c20_i32_38 = arith.constant 20 : i32
    %79 = vector.broadcast %c20_i32_38 : i32 to vector<4x30xi32>
    %80 = arith.cmpi sge, %31, %79 : vector<4x30xi32>
    %c30_i32 = arith.constant 30 : i32
    %81 = vector.broadcast %c30_i32 : i32 to vector<4x30xi32>
    %82 = arith.cmpi slt, %31, %81 : vector<4x30xi32>
    %83 = arith.andi %80, %82 : vector<4x30xi1>
    %cst_39 = arith.constant -1.000000e+30 : f32
    %84 = vector.broadcast %cst_39 : f32 to vector<4x30xf32>
    %85 = arith.select %83, %30, %84 : vector<4x30xi1>, vector<4x30xf32>
    %cst_40 = arith.constant dense<0xFF800000> : vector<4xf32>
    %86 = vector.multi_reduction <maximumf>, %85, %cst_40 [1] : vector<4x30xf32> to vector<4xf32>
    %87 = vector.shape_cast %86 : vector<4xf32> to vector<4x1xf32>
    %88 = vector.broadcast %87 : vector<4x1xf32> to vector<4x30xf32>
    %89 = arith.subf %85, %88 : vector<4x30xf32>
    %90 = math.exp %89 : vector<4x30xf32>
    %cst_41 = arith.constant 0.000000e+00 : f32
    %91 = vector.broadcast %cst_41 : f32 to vector<4x30xf32>
    %92 = arith.select %83, %90, %91 : vector<4x30xi1>, vector<4x30xf32>
    %cst_42 = arith.constant dense<0.000000e+00> : vector<4xf32>
    %93 = vector.multi_reduction <add>, %92, %cst_42 [1] : vector<4x30xf32> to vector<4xf32>
    %94 = vector.shape_cast %93 : vector<4xf32> to vector<4x1xf32>
    %95 = math.log %94 : vector<4x1xf32>
    %96 = arith.addf %87, %95 : vector<4x1xf32>
    %cst_43 = arith.constant 0.000000e+00 : f32
    %97 = vector.shape_cast %96 : vector<4x1xf32> to vector<4x1xf32>
    %98 = vector.broadcast %97 : vector<4x1xf32> to vector<4x30xf32>
    %99 = vector.broadcast %cst_43 : f32 to vector<4x30xf32>
    %100 = arith.select %83, %98, %99 : vector<4x30xi1>, vector<4x30xf32>
    %101 = arith.addf %78, %100 : vector<4x30xf32>
    %102 = arith.subf %30, %101 : vector<4x30xf32>
    %c0_44 = arith.constant 0 : index
    %c0_45 = arith.constant 0 : index
    %103 = vector.load %arg2[%c0_44, %c0_45] : memref<4x30xf32, #tpu.memory_space<vmem>>, vector<4x30xf32>
    %104 = arith.mulf %102, %103 : vector<4x30xf32>
    %cst_46 = arith.constant dense<0.000000e+00> : vector<4xf32>
    %105 = vector.multi_reduction <add>, %104, %cst_46 [1] : vector<4x30xf32> to vector<4xf32>
    %106 = vector.shape_cast %105 : vector<4xf32> to vector<4x1xf32>
    %cst_47 = arith.constant -0.333333343 : f32
    %107 = vector.broadcast %cst_47 : f32 to vector<4x1xf32>
    %108 = arith.mulf %107, %106 : vector<4x1xf32>
    %c0_48 = arith.constant 0 : index
    %c0_49 = arith.constant 0 : index
    %109 = vector.load %arg10[%c0_48, %c0_49] : memref<36x128xf32, #tpu.memory_space<vmem>>, vector<36x128xf32>
    %c0_50 = arith.constant 0 : index
    %c0_51 = arith.constant 0 : index
    %110 = vector.load %arg11[%c0_50, %c0_51] : memref<36x128xf32, #tpu.memory_space<vmem>>, vector<36x128xf32>
    %cst_52 = arith.constant 0.000000e+00 : f32
    %111 = vector.broadcast %cst_52 : f32 to vector<36x128xf32>
    %c0_53 = arith.constant 0 : index
    %c0_54 = arith.constant 0 : index
    %c0_55 = arith.constant 0 : index
    %112 = vector.load %arg9[%c0_53, %c0_54, %c0_55] : memref<3x36x128xf32, #tpu.memory_space<vmem>>, vector<1x36x128xf32>
    %113 = vector.shape_cast %112 : vector<1x36x128xf32> to vector<36x128xf32>
    %114 = arith.mulf %113, %113 : vector<36x128xf32>
    %cst_56 = arith.constant 5.000000e-01 : f32
    %115 = vector.broadcast %cst_56 : f32 to vector<36x128xf32>
    %116 = arith.mulf %115, %114 : vector<36x128xf32>
    %cst_57 = arith.constant -0.918938517 : f32
    %117 = vector.broadcast %cst_57 : f32 to vector<36x128xf32>
    %118 = arith.subf %117, %116 : vector<36x128xf32>
    %cst_58 = arith.constant -81376.8984 : f32
    %119 = vector.broadcast %cst_58 : f32 to vector<36x128xf32>
    %120 = arith.mulf %119, %114 : vector<36x128xf32>
    %121 = math.exp %120 : vector<36x128xf32>
    %cst_59 = arith.constant 201.714401 : f32
    %122 = vector.broadcast %cst_59 : f32 to vector<36x128xf32>
    %123 = arith.mulf %122, %121 : vector<36x128xf32>
    %cst_60 = arith.constant 5.000000e-01 : f32
    %124 = vector.broadcast %cst_60 : f32 to vector<36x128xf32>
    %125 = arith.addf %124, %123 : vector<36x128xf32>
    %126 = math.log %125 : vector<36x128xf32>
    %127 = arith.addf %118, %126 : vector<36x128xf32>
    %128 = arith.subf %113, %109 : vector<36x128xf32>
    %129 = arith.mulf %128, %128 : vector<36x128xf32>
    %cst_61 = arith.constant 0.000000e+00 : f32
    %130 = vector.broadcast %cst_61 : f32 to vector<36x128xf32>
    %131 = arith.subf %130, %129 : vector<36x128xf32>
    %132 = arith.mulf %131, %110 : vector<36x128xf32>
    %133 = arith.subf %132, %127 : vector<36x128xf32>
    %134 = arith.addf %111, %133 : vector<36x128xf32>
    %c1_62 = arith.constant 1 : index
    %c0_63 = arith.constant 0 : index
    %c0_64 = arith.constant 0 : index
    %135 = vector.load %arg9[%c1_62, %c0_63, %c0_64] : memref<3x36x128xf32, #tpu.memory_space<vmem>>, vector<1x36x128xf32>
    %136 = vector.shape_cast %135 : vector<1x36x128xf32> to vector<36x128xf32>
    %137 = arith.mulf %136, %136 : vector<36x128xf32>
    %cst_65 = arith.constant 5.000000e-01 : f32
    %138 = vector.broadcast %cst_65 : f32 to vector<36x128xf32>
    %139 = arith.mulf %138, %137 : vector<36x128xf32>
    %cst_66 = arith.constant -0.918938517 : f32
    %140 = vector.broadcast %cst_66 : f32 to vector<36x128xf32>
    %141 = arith.subf %140, %139 : vector<36x128xf32>
    %cst_67 = arith.constant -81376.8984 : f32
    %142 = vector.broadcast %cst_67 : f32 to vector<36x128xf32>
    %143 = arith.mulf %142, %137 : vector<36x128xf32>
    %144 = math.exp %143 : vector<36x128xf32>
    %cst_68 = arith.constant 201.714401 : f32
    %145 = vector.broadcast %cst_68 : f32 to vector<36x128xf32>
    %146 = arith.mulf %145, %144 : vector<36x128xf32>
    %cst_69 = arith.constant 5.000000e-01 : f32
    %147 = vector.broadcast %cst_69 : f32 to vector<36x128xf32>
    %148 = arith.addf %147, %146 : vector<36x128xf32>
    %149 = math.log %148 : vector<36x128xf32>
    %150 = arith.addf %141, %149 : vector<36x128xf32>
    %151 = arith.subf %136, %109 : vector<36x128xf32>
    %152 = arith.mulf %151, %151 : vector<36x128xf32>
    %cst_70 = arith.constant 0.000000e+00 : f32
    %153 = vector.broadcast %cst_70 : f32 to vector<36x128xf32>
    %154 = arith.subf %153, %152 : vector<36x128xf32>
    %155 = arith.mulf %154, %110 : vector<36x128xf32>
    %156 = arith.subf %155, %150 : vector<36x128xf32>
    %157 = arith.addf %134, %156 : vector<36x128xf32>
    %c2 = arith.constant 2 : index
    %c0_71 = arith.constant 0 : index
    %c0_72 = arith.constant 0 : index
    %158 = vector.load %arg9[%c2, %c0_71, %c0_72] : memref<3x36x128xf32, #tpu.memory_space<vmem>>, vector<1x36x128xf32>
    %159 = vector.shape_cast %158 : vector<1x36x128xf32> to vector<36x128xf32>
    %160 = arith.mulf %159, %159 : vector<36x128xf32>
    %cst_73 = arith.constant 5.000000e-01 : f32
    %161 = vector.broadcast %cst_73 : f32 to vector<36x128xf32>
    %162 = arith.mulf %161, %160 : vector<36x128xf32>
    %cst_74 = arith.constant -0.918938517 : f32
    %163 = vector.broadcast %cst_74 : f32 to vector<36x128xf32>
    %164 = arith.subf %163, %162 : vector<36x128xf32>
    %cst_75 = arith.constant -81376.8984 : f32
    %165 = vector.broadcast %cst_75 : f32 to vector<36x128xf32>
    %166 = arith.mulf %165, %160 : vector<36x128xf32>
    %167 = math.exp %166 : vector<36x128xf32>
    %cst_76 = arith.constant 201.714401 : f32
    %168 = vector.broadcast %cst_76 : f32 to vector<36x128xf32>
    %169 = arith.mulf %168, %167 : vector<36x128xf32>
    %cst_77 = arith.constant 5.000000e-01 : f32
    %170 = vector.broadcast %cst_77 : f32 to vector<36x128xf32>
    %171 = arith.addf %170, %169 : vector<36x128xf32>
    %172 = math.log %171 : vector<36x128xf32>
    %173 = arith.addf %164, %172 : vector<36x128xf32>
    %174 = arith.subf %159, %109 : vector<36x128xf32>
    %175 = arith.mulf %174, %174 : vector<36x128xf32>
    %cst_78 = arith.constant 0.000000e+00 : f32
    %176 = vector.broadcast %cst_78 : f32 to vector<36x128xf32>
    %177 = arith.subf %176, %175 : vector<36x128xf32>
    %178 = arith.mulf %177, %110 : vector<36x128xf32>
    %179 = arith.subf %178, %173 : vector<36x128xf32>
    %180 = arith.addf %157, %179 : vector<36x128xf32>
    %181 = vector.shape_cast %180 : vector<36x128xf32> to vector<1x36x128xf32>
    %cst_79 = arith.constant dense<0.000000e+00> : vector<1xf32>
    %182 = vector.multi_reduction <add>, %181, %cst_79 [1, 2] : vector<1x36x128xf32> to vector<1xf32>
    %183 = vector.shape_cast %182 : vector<1xf32> to vector<1x1x1xf32>
    %184 = vector.extract %183[0, 0, 0] : f32 from vector<1x1x1xf32>
    %cst_80 = arith.constant 0.333333343 : f32
    %185 = arith.mulf %184, %cst_80 : f32
    %c0_81 = arith.constant 0 : index
    %186 = memref.load %arg0[%c0_81] : memref<1xf32, #tpu.memory_space<smem>>
    %187 = arith.addf %185, %186 : f32
    %cst_82 = arith.constant 377.573547 : f32
    %188 = arith.addf %187, %cst_82 : f32
    %189 = vector.broadcast %188 : f32 to vector<4x1xf32>
    %190 = arith.addf %108, %189 : vector<4x1xf32>
    %c0_83 = arith.constant 0 : index
    %c0_84 = arith.constant 0 : index
    %191 = vector.load %arg12[%c0_83, %c0_84] : memref<4x1xf32, #tpu.memory_space<vmem>>, vector<4x1xf32>
    tpu.vector_store %arg12[%c0_83, %c0_84], %190 {strides = array<i32>} : memref<4x1xf32, #tpu.memory_space<vmem>>, vector<4x1xf32>,
    return
  }
}

</mosaic_0001>

<llo_original>
// kernel: bbb_loss.1
$region0: #{bbb_loss.1}
  #allocation0 [shape = 'u32[]', space=smem, size = 0x4, offset = 0x4, fixed_abs, tag = 'smem constant byte address 0x4 - core index']
  #allocation1 [shape = 'u32[144,128]{1,0:T(1,128)}', space=vmem, size = 0x12000, scoped, tag = 'internal scratch']
  #allocation2 [shape = 'f32[1]{0:T(128)S(6)}', space=smem, size = 0x200, scoped, tag = 'scoped memory for bbb_loss.1']
  %s0 = inlined_call_operand.<no memory space> [shape: f32[1], index: 0, kind: input, shape index: {}]
  %s1 = inlined_call_operand.vmem [shape: f32[4,192], index: 1, kind: input, shape index: {}]
  %s2 = inlined_call_operand.vmem [shape: f32[4,30], index: 2, kind: input, shape index: {}]
  %s3 = inlined_call_operand.hbm [shape: f32[192,96], index: 3, kind: input, shape index: {}]
  %s4 = inlined_call_operand.vmem [shape: f32[1,96], index: 4, kind: input, shape index: {}]
  %s5 = inlined_call_operand.hbm [shape: f32[2,96,96], index: 5, kind: input, shape index: {}]
  %s6 = inlined_call_operand.vmem [shape: f32[2,1,96], index: 6, kind: input, shape index: {}]
  %s7 = inlined_call_operand.vmem [shape: f32[96,30], index: 7, kind: input, shape index: {}]
  %s8 = inlined_call_operand.vmem [shape: f32[1,30], index: 8, kind: input, shape index: {}]
  %s9 = inlined_call_operand.vmem [shape: f32[3,36,128], index: 9, kind: input, shape index: {}]
  %s10 = inlined_call_operand.hbm [shape: f32[36,128], index: 10, kind: input, shape index: {}]
  %s11 = inlined_call_operand.hbm [shape: f32[36,128], index: 11, kind: input, shape index: {}]
  %s12 = inlined_call_operand.vmem [shape: f32[4,1], index: 12, kind: output, shape index: {}]
  %s13 = sld [smem:[#allocation0]]
  $region74: #{bbb_loss.1} parent=0
    _
  %s15 = ssub.s32 1, %s13
  %s16 = scalar_select 0, %s15, %s13
  %17 = sst [smem:[#allocation2]] %s0
  $region1: #{bbb_loss.1} parent=0
    #allocation3 [shape = 'u8[98304]{0}', space=vmem, size = 0x18000, scoped, tag = 'input window, operand 3, single buffered']
    #allocation4 [shape = 's32[1]{0}', space=sflag, size = 0x4, scoped, tag = 'scoped memory for bbb_loss.1']
    #allocation5 [shape = 'u8[98304]{0}', space=vmem, size = 0x18000, scoped, tag = 'input window, operand 5, single buffered']
    #allocation6 [shape = 's32[1]{0}', space=sflag, size = 0x4, scoped, tag = 'scoped memory for bbb_loss.1']
    #allocation7 [shape = 'u8[20480]{0}', space=vmem, size = 0x5000, scoped, tag = 'input window, operand 10, single buffered']
    #allocation8 [shape = 'u8[20480]{0}', space=vmem, size = 0x5000, scoped, tag = 'input window, operand 11, single buffered']
    #allocation9 [shape = 's32[1]{0}', space=sflag, size = 0x4, scoped, tag = 'scoped memory for bbb_loss.1']
    %18 = vsyncpa [#allocation4], 0
    %19 = vsyncpa [#allocation6], 0
    %20 = vsyncpa [#allocation9], 0
    // Predicated region
    $region2: #{bbb_loss.1} parent=1 // pred_check
      _
    $region3: #{bbb_loss.1} parent=1 // pred_check_branch
      %22 = sbr.rel (0) target = $region5
    $region4: #{bbb_loss.1} parent=1 // pred_region
      _
    $region5: #{bbb_loss.1} parent=1 // pred_fallthru
      _
    // Predicated region
    $region6: #{bbb_loss.1} parent=1 // pred_check
      _
    $region7: #{bbb_loss.1} parent=1 // pred_check_branch
      %24 = sbr.rel (0) target = $region9
    $region8: #{bbb_loss.1} parent=1 // pred_region
      _
    $region9: #{bbb_loss.1} parent=1 // pred_fallthru
      _
    // Predicated region
    $region10: #{bbb_loss.1} parent=1 // pred_check
      _
    $region11: #{bbb_loss.1} parent=1 // pred_check_branch
      %26 = sbr.rel (0) target = $region13
    $region12: #{bbb_loss.1} parent=1 // pred_region
      _
    $region13: #{bbb_loss.1} parent=1 // pred_fallthru
      _
    // Predicated region
    $region14: #{bbb_loss.1} parent=1 // pred_check
      _
    $region15: #{bbb_loss.1} parent=1 // pred_check_branch
      %28 = sbr.rel (0) target = $region17
    $region16: #{bbb_loss.1} parent=1 // pred_region
      %s30 = ssub.s32 3072, 3072
      %31 = vsyncadd [#allocation4], %s30
      %s32 = sshll.u32 [#allocation3], 4
      %s33 = int_to_ptr.vmem [resolvable:$true] %s32
      %38 = dma.hbm_to_vmem [thread:$0]  %s3, 3072, %s33, [#allocation4], 128, 128, 8
    $region17: #{bbb_loss.1} parent=1 // pred_fallthru
      _
    // Predicated region
    $region18: #{bbb_loss.1} parent=1 // pred_check
      _
    $region19: #{bbb_loss.1} parent=1 // pred_check_branch
      %40 = sbr.rel (0) target = $region21
    $region20: #{bbb_loss.1} parent=1 // pred_region
      _
    $region21: #{bbb_loss.1} parent=1 // pred_fallthru
      _
    // Predicated region
    $region22: #{bbb_loss.1} parent=1 // pred_check
      _
    $region23: #{bbb_loss.1} parent=1 // pred_check_branch
      %42 = sbr.rel (0) target = $region25
    $region24: #{bbb_loss.1} parent=1 // pred_region
      %s44 = ssub.s32 3072, 3072
      %45 = vsyncadd [#allocation6], %s44
      %s46 = sshll.u32 [#allocation5], 4
      %s47 = int_to_ptr.vmem [resolvable:$true] %s46
      %52 = dma.hbm_to_vmem [thread:$0]  %s5, 3072, %s47, [#allocation6], 128, 128, 8
    $region25: #{bbb_loss.1} parent=1 // pred_fallthru
      _
    // Predicated region
    $region26: #{bbb_loss.1} parent=1 // pred_check
      _
    $region27: #{bbb_loss.1} parent=1 // pred_check_branch
      %54 = sbr.rel (0) target = $region29
    $region28: #{bbb_loss.1} parent=1 // pred_region
      _
    $region29: #{bbb_loss.1} parent=1 // pred_fallthru
      _
    // Predicated region
    $region30: #{bbb_loss.1} parent=1 // pred_check
      _
    $region31: #{bbb_loss.1} parent=1 // pred_check_branch
      %56 = sbr.rel (0) target = $region33
    $region32: #{bbb_loss.1} parent=1 // pred_region
      _
    $region33: #{bbb_loss.1} parent=1 // pred_fallthru
      _
    // Predicated region
    $region34: #{bbb_loss.1} parent=1 // pred_check
      _
    $region35: #{bbb_loss.1} parent=1 // pred_check_branch
      %58 = sbr.rel (0) target = $region37
    $region36: #{bbb_loss.1} parent=1 // pred_region
      _
    $region37: #{bbb_loss.1} parent=1 // pred_fallthru
      _
    // Predicated region
    $region38: #{bbb_loss.1} parent=1 // pred_check
      _
    $region39: #{bbb_loss.1} parent=1 // pred_check_branch
      %60 = sbr.rel (0) target = $region41
    $region40: #{bbb_loss.1} parent=1 // pred_region
      _
    $region41: #{bbb_loss.1} parent=1 // pred_fallthru
      _
    // Predicated region
    $region42: #{bbb_loss.1} parent=1 // pred_check
      _
    $region43: #{bbb_loss.1} parent=1 // pred_check_branch
      %62 = sbr.rel (0) target = $region45
    $region44: #{bbb_loss.1} parent=1 // pred_region
      %s64 = ssub.s32 640, 640
      %65 = vsyncadd [#allocation6], %s64
      %s66 = sshll.u32 [#allocation7], 4
      %s67 = int_to_ptr.vmem [resolvable:$true] %s66
      %72 = dma.hbm_to_vmem [thread:$0]  %s10, 640, %s67, [#allocation6], 128, 128, 8
    $region45: #{bbb_loss.1} parent=1 // pred_fallthru
      _
    // Predicated region
    $region46: #{bbb_loss.1} parent=1 // pred_check
      _
    $region47: #{bbb_loss.1} parent=1 // pred_check_branch
      %74 = sbr.rel (0) target = $region49
    $region48: #{bbb_loss.1} parent=1 // pred_region
      %s76 = ssub.s32 640, 640
      %77 = vsyncadd [#allocation9], %s76
      %s78 = sshll.u32 [#allocation8], 4
      %s79 = int_to_ptr.vmem [resolvable:$true] %s78
      %84 = dma.hbm_to_vmem [thread:$0]  %s11, 640, %s79, [#allocation9], 128, 128, 8
    $region49: #{bbb_loss.1} parent=1 // pred_fallthru
      _
    // Predicated region
    $region50: #{bbb_loss.1} parent=1 // pred_check
      _
    $region51: #{bbb_loss.1} parent=1 // pred_check_branch
      %86 = sbr.rel (0) target = $region53
    $region52: #{bbb_loss.1} parent=1 // pred_region
      %87 = dma.done [#allocation4], 3072
    $region53: #{bbb_loss.1} parent=1 // pred_fallthru
      _
    // Predicated region
    $region54: #{bbb_loss.1} parent=1 // pred_check
      _
    $region55: #{bbb_loss.1} parent=1 // pred_check_branch
      %89 = sbr.rel (0) target = $region57
    $region56: #{bbb_loss.1} parent=1 // pred_region
      %90 = dma.done [#allocation6], 3072
    $region57: #{bbb_loss.1} parent=1 // pred_fallthru
      _
    // Predicated region
    $region58: #{bbb_loss.1} parent=1 // pred_check
      _
    $region59: #{bbb_loss.1} parent=1 // pred_check_branch
      %92 = sbr.rel (0) target = $region61
    $region60: #{bbb_loss.1} parent=1 // pred_region
      %93 = dma.done [#allocation6], 640
    $region61: #{bbb_loss.1} parent=1 // pred_fallthru
      _
    // Predicated region
    $region62: #{bbb_loss.1} parent=1 // pred_check
      _
    $region63: #{bbb_loss.1} parent=1 // pred_check_branch
      %95 = sbr.rel (0) target = $region65
    $region64: #{bbb_loss.1} parent=1 // pred_region
      %96 = dma.done [#allocation9], 640
    $region65: #{bbb_loss.1} parent=1 // pred_fallthru
      _
    %v97 = vld [vmem:[%s1] sm:$0xff]
    %v98 = vld [vmem:[#allocation3] sm:$0xff]
    %v99 = vld [vmem:[#allocation3 + $0x8] sm:$0xff]
    %v100 = vld [vmem:[#allocation3 + $0x10] sm:$0xff]
    %v101 = vld [vmem:[#allocation3 + $0x18] sm:$0xff]
    %v102 = vld [vmem:[#allocation3 + $0x20] sm:$0xff]
    %v103 = vld [vmem:[#allocation3 + $0x28] sm:$0xff]
    %v104 = vld [vmem:[#allocation3 + $0x30] sm:$0xff]
    %v105 = vld [vmem:[#allocation3 + $0x38] sm:$0xff]
    %v106 = vld [vmem:[#allocation3 + $0x40] sm:$0xff]
    %v107 = vld [vmem:[#allocation3 + $0x48] sm:$0xff]
    %v108 = vld [vmem:[#allocation3 + $0x50] sm:$0xff]
    %v109 = vld [vmem:[#allocation3 + $0x58] sm:$0xff]
    %v110 = vld [vmem:[#allocation3 + $0x60] sm:$0xff]
    %v111 = vld [vmem:[#allocation3 + $0x68] sm:$0xff]
    %v112 = vld [vmem:[#allocation3 + $0x70] sm:$0xff]
    %v113 = vld [vmem:[#allocation3 + $0x78] sm:$0xff]
    %v114 = vld [vmem:[#allocation3 + $0x80] sm:$0xff]
    %v115 = vld [vmem:[#allocation3 + $0x88] sm:$0xff]
    %v116 = vld [vmem:[#allocation3 + $0x90] sm:$0xff]
    %v117 = vld [vmem:[#allocation3 + $0x98] sm:$0xff]
    %v118 = vld [vmem:[#allocation3 + $0xa0] sm:$0xff]
    %v119 = vld [vmem:[#allocation3 + $0xa8] sm:$0xff]
    %v120 = vld [vmem:[#allocation3 + $0xb0] sm:$0xff]
    %v121 = vld [vmem:[#allocation3 + $0xb8] sm:$0xff]
    %v122 = vld [vmem:[%s4] sm:$0x1]
    %v124 = vlaneseq
    %v125 = vshrl.u32 %v124, 7
    %v126 = vsub.s32 0, %v125
    %v127 = vrot.slane %v122, %v126
    %v130 = vcombine.high %v97, %v97
    %vm131 = vcmask 523264
    %v132 = vsel %vm131, %v130, 0
    %134 = vmatprep.subr.mxu0 0.0
    %135 = vmatpush1.msra.mxu0 %v113
    %136 = vmatprep.subr.mxu0 0.0
    %137 = vmatpush1.msra.mxu0 %v112
    %138 = vmatprep.subr.mxu0 0.0
    %139 = vmatpush1.msra.mxu0 %v111
    %140 = vmatprep.subr.mxu0 0.0
    %141 = vmatpush1.msra.mxu0 %v110
    %142 = vmatprep.subr.mxu0 0.0
    %143 = vmatpush1.msra.mxu0 %v109
    %144 = vmatprep.subr.mxu0 0.0
    %145 = vmatpush1.msra.mxu0 %v108
    %146 = vmatprep.subr.mxu0 0.0
    %147 = vmatpush1.msra.mxu0 %v107
    %148 = vmatprep.subr.mxu0 0.0
    %149 = vmatpush1.msra.mxu0 %v106
    %150 = vmatprep.subr.mxu0 0.0
    %151 = vmatpush1.msra.mxu0 %v105
    %152 = vmatprep.subr.mxu0 0.0
    %153 = vmatpush1.msra.mxu0 %v104
    %154 = vmatprep.subr.mxu0 0.0
    %155 = vmatpush1.msra.mxu0 %v103
    %156 = vmatprep.subr.mxu0 0.0
    %157 = vmatpush1.msra.mxu0 %v102
    %158 = vmatprep.subr.mxu0 0.0
    %159 = vmatpush1.msra.mxu0 %v101
    %160 = vmatprep.subr.mxu0 0.0
    %161 = vmatpush1.msra.mxu0 %v100
    %162 = vmatprep.subr.mxu0 0.0
    %163 = vmatpush1.msra.mxu0 %v99
    %164 = vmatprep.subr.mxu0 0.0
    %165 = vmatpush1.msra.mxu0 %v98
    %166 = vmatprep.subr.mxu0 0.0
    %167 = vmatpush2.msra.mxu0 0.0
    %168 = vmatprep.subr.mxu0 0.0
    %169 = vmatpush2.msra.mxu0 0.0
    %170 = vmatprep.subr.mxu0 0.0
    %171 = vmatpush2.msra.mxu0 0.0
    %172 = vmatprep.subr.mxu0 0.0
    %173 = vmatpush2.msra.mxu0 0.0
    %174 = vmatprep.subr.mxu0 0.0
    %175 = vmatpush2.msra.mxu0 0.0
    %176 = vmatprep.subr.mxu0 0.0
    %177 = vmatpush2.msra.mxu0 0.0
    %178 = vmatprep.subr.mxu0 0.0
    %179 = vmatpush2.msra.mxu0 0.0
    %180 = vmatprep.subr.mxu0 0.0
    %181 = vmatpush2.msra.mxu0 0.0
    %182 = vmatprep.subr.mxu0 0.0
    %183 = vmatpush2.msra.mxu0 %v121
    %184 = vmatprep.subr.mxu0 0.0
    %185 = vmatpush2.msra.mxu0 %v120
    %186 = vmatprep.subr.mxu0 0.0
    %187 = vmatpush2.msra.mxu0 %v119
    %188 = vmatprep.subr.mxu0 0.0
    %189 = vmatpush2.msra.mxu0 %v118
    %190 = vmatprep.subr.mxu0 0.0
    %191 = vmatpush2.msra.mxu0 %v117
    %192 = vmatprep.subr.mxu0 0.0
    %193 = vmatpush2.msra.mxu0 %v116
    %194 = vmatprep.subr.mxu0 0.0
    %195 = vmatpush2.msra.mxu0 %v115
    %196 = vmatprep.subr.mxu0 0.0
    %197 = vmatpush2.msra.mxu0 %v114
    %198 = vmatprep.mubr.f32.mxu0 %v132
    %199 = vmatmul.mubr.f32.gmra.mxu0 %v97
    %v200 = vpop.f32.mrf.mxu0
    %v201 = vadd.f32 %v127, %v200
    %v202 = vpop.f32.mrf.mxu0
    %203 = vdwg.mxu0
    %v204 = vmax.f32 %v201, 0.0
    %v205 = vld [vmem:[#allocation5] sm:$0xff]
    %v206 = vld [vmem:[#allocation5 + $0x8] sm:$0xff]
    %v207 = vld [vmem:[#allocation5 + $0x10] sm:$0xff]
    %v208 = vld [vmem:[#allocation5 + $0x18] sm:$0xff]
    %v209 = vld [vmem:[#allocation5 + $0x20] sm:$0xff]
    %v210 = vld [vmem:[#allocation5 + $0x28] sm:$0xff]
    %v211 = vld [vmem:[#allocation5 + $0x30] sm:$0xff]
    %v212 = vld [vmem:[#allocation5 + $0x38] sm:$0xff]
    %v213 = vld [vmem:[#allocation5 + $0x40] sm:$0xff]
    %v214 = vld [vmem:[#allocation5 + $0x48] sm:$0xff]
    %v215 = vld [vmem:[#allocation5 + $0x50] sm:$0xff]
    %v216 = vld [vmem:[#allocation5 + $0x58] sm:$0xff]
    %v217 = vld [vmem:[%s6] sm:$0x1]
    %v219 = vlaneseq
    %v220 = vshrl.u32 %v219, 7
    %v221 = vsub.s32 0, %v220
    %v222 = vrot.slane %v217, %v221
    %vm224 = vcmask 785408
    %v226 = vsel %vm224, %v204, 0
    %228 = vmatprep.subr.mxu0 0.0
    %229 = vmatpush1.msra.mxu0 0.0
    %230 = vmatprep.subr.mxu0 0.0
    %231 = vmatpush1.msra.mxu0 0.0
    %232 = vmatprep.subr.mxu0 0.0
    %233 = vmatpush1.msra.mxu0 0.0
    %234 = vmatprep.subr.mxu0 0.0
    %235 = vmatpush1.msra.mxu0 0.0
    %236 = vmatprep.subr.mxu0 0.0
    %237 = vmatpush1.msra.mxu0 %v216
    %238 = vmatprep.subr.mxu0 0.0
    %239 = vmatpush1.msra.mxu0 %v215
    %240 = vmatprep.subr.mxu0 0.0
    %241 = vmatpush1.msra.mxu0 %v214
    %242 = vmatprep.subr.mxu0 0.0
    %243 = vmatpush1.msra.mxu0 %v213
    %244 = vmatprep.subr.mxu0 0.0
    %245 = vmatpush1.msra.mxu0 %v212
    %246 = vmatprep.subr.mxu0 0.0
    %247 = vmatpush1.msra.mxu0 %v211
    %248 = vmatprep.subr.mxu0 0.0
    %249 = vmatpush1.msra.mxu0 %v210
    %250 = vmatprep.subr.mxu0 0.0
    %251 = vmatpush1.msra.mxu0 %v209
    %252 = vmatprep.subr.mxu0 0.0
    %253 = vmatpush1.msra.mxu0 %v208
    %254 = vmatprep.subr.mxu0 0.0
    %255 = vmatpush1.msra.mxu0 %v207
    %256 = vmatprep.subr.mxu0 0.0
    %257 = vmatpush1.msra.mxu0 %v206
    %258 = vmatprep.subr.mxu0 0.0
    %259 = vmatpush1.msra.mxu0 %v205
    %260 = vmatprep.subr.mxu0 0.0
    %261 = vmatpush2.msra.mxu0 0.0
    %262 = vmatprep.subr.mxu0 0.0
    %263 = vmatpush2.msra.mxu0 0.0
    %264 = vmatprep.subr.mxu0 0.0
    %265 = vmatpush2.msra.mxu0 0.0
    %266 = vmatprep.subr.mxu0 0.0
    %267 = vmatpush2.msra.mxu0 0.0
    %268 = vmatprep.subr.mxu0 0.0
    %269 = vmatpush2.msra.mxu0 0.0
    %270 = vmatprep.subr.mxu0 0.0
    %271 = vmatpush2.msra.mxu0 0.0
    %272 = vmatprep.subr.mxu0 0.0
    %273 = vmatpush2.msra.mxu0 0.0
    %274 = vmatprep.subr.mxu0 0.0
    %275 = vmatpush2.msra.mxu0 0.0
    %276 = vmatprep.subr.mxu0 0.0
    %277 = vmatpush2.msra.mxu0 0.0
    %278 = vmatprep.subr.mxu0 0.0
    %279 = vmatpush2.msra.mxu0 0.0
    %280 = vmatprep.subr.mxu0 0.0
    %281 = vmatpush2.msra.mxu0 0.0
    %282 = vmatprep.subr.mxu0 0.0
    %283 = vmatpush2.msra.mxu0 0.0
    %284 = vmatprep.subr.mxu0 0.0
    %285 = vmatpush2.msra.mxu0 0.0
    %286 = vmatprep.subr.mxu0 0.0
    %287 = vmatpush2.msra.mxu0 0.0
    %288 = vmatprep.subr.mxu0 0.0
    %289 = vmatpush2.msra.mxu0 0.0
    %290 = vmatprep.subr.mxu0 0.0
    %291 = vmatpush2.msra.mxu0 0.0
    %292 = vmatprep.mubr.f32.mxu0 0.0
    %293 = vmatmul.mubr.f32.gmra.mxu0 %v226
    %v294 = vpop.f32.mrf.mxu0
    %v295 = vadd.f32 %v222, %v294
    %v296 = vpop.f32.mrf.mxu0
    %297 = vdwg.mxu0
    %v298 = vmax.f32 %v295, 0.0
    %s299 = scalar_lea.vmem [#allocation5], 96
    %v300 = vld [vmem:[%s299] sm:$0xff]
    %v301 = vld [vmem:[%s299 + $0x8] sm:$0xff]
    %v302 = vld [vmem:[%s299 + $0x10] sm:$0xff]
    %v303 = vld [vmem:[%s299 + $0x18] sm:$0xff]
    %v304 = vld [vmem:[%s299 + $0x20] sm:$0xff]
    %v305 = vld [vmem:[%s299 + $0x28] sm:$0xff]
    %v306 = vld [vmem:[%s299 + $0x30] sm:$0xff]
    %v307 = vld [vmem:[%s299 + $0x38] sm:$0xff]
    %v308 = vld [vmem:[%s299 + $0x40] sm:$0xff]
    %v309 = vld [vmem:[%s299 + $0x48] sm:$0xff]
    %v310 = vld [vmem:[%s299 + $0x50] sm:$0xff]
    %v311 = vld [vmem:[%s299 + $0x58] sm:$0xff]
    %s312 = scalar_lea.vmem %s6, 1
    %v313 = vld [vmem:[%s312] sm:$0x1]
    %v315 = vlaneseq
    %v316 = vshrl.u32 %v315, 7
    %v317 = vsub.s32 0, %v316
    %v318 = vrot.slane %v313, %v317
    %v321 = vsel %vm224, %v298, 0
    %323 = vmatprep.subr.mxu0 0.0
    %324 = vmatpush1.msra.mxu0 0.0
    %325 = vmatprep.subr.mxu0 0.0
    %326 = vmatpush1.msra.mxu0 0.0
    %327 = vmatprep.subr.mxu0 0.0
    %328 = vmatpush1.msra.mxu0 0.0
    %329 = vmatprep.subr.mxu0 0.0
    %330 = vmatpush1.msra.mxu0 0.0
    %331 = vmatprep.subr.mxu0 0.0
    %332 = vmatpush1.msra.mxu0 %v311
    %333 = vmatprep.subr.mxu0 0.0
    %334 = vmatpush1.msra.mxu0 %v310
    %335 = vmatprep.subr.mxu0 0.0
    %336 = vmatpush1.msra.mxu0 %v309
    %337 = vmatprep.subr.mxu0 0.0
    %338 = vmatpush1.msra.mxu0 %v308
    %339 = vmatprep.subr.mxu0 0.0
    %340 = vmatpush1.msra.mxu0 %v307
    %341 = vmatprep.subr.mxu0 0.0
    %342 = vmatpush1.msra.mxu0 %v306
    %343 = vmatprep.subr.mxu0 0.0
    %344 = vmatpush1.msra.mxu0 %v305
    %345 = vmatprep.subr.mxu0 0.0
    %346 = vmatpush1.msra.mxu0 %v304
    %347 = vmatprep.subr.mxu0 0.0
    %348 = vmatpush1.msra.mxu0 %v303
    %349 = vmatprep.subr.mxu0 0.0
    %350 = vmatpush1.msra.mxu0 %v302
    %351 = vmatprep.subr.mxu0 0.0
    %352 = vmatpush1.msra.mxu0 %v301
    %353 = vmatprep.subr.mxu0 0.0
    %354 = vmatpush1.msra.mxu0 %v300
    %355 = vmatprep.subr.mxu0 0.0
    %356 = vmatpush2.msra.mxu0 0.0
    %357 = vmatprep.subr.mxu0 0.0
    %358 = vmatpush2.msra.mxu0 0.0
    %359 = vmatprep.subr.mxu0 0.0
    %360 = vmatpush2.msra.mxu0 0.0
    %361 = vmatprep.subr.mxu0 0.0
    %362 = vmatpush2.msra.mxu0 0.0
    %363 = vmatprep.subr.mxu0 0.0
    %364 = vmatpush2.msra.mxu0 0.0
    %365 = vmatprep.subr.mxu0 0.0
    %366 = vmatpush2.msra.mxu0 0.0
    %367 = vmatprep.subr.mxu0 0.0
    %368 = vmatpush2.msra.mxu0 0.0
    %369 = vmatprep.subr.mxu0 0.0
    %370 = vmatpush2.msra.mxu0 0.0
    %371 = vmatprep.subr.mxu0 0.0
    %372 = vmatpush2.msra.mxu0 0.0
    %373 = vmatprep.subr.mxu0 0.0
    %374 = vmatpush2.msra.mxu0 0.0
    %375 = vmatprep.subr.mxu0 0.0
    %376 = vmatpush2.msra.mxu0 0.0
    %377 = vmatprep.subr.mxu0 0.0
    %378 = vmatpush2.msra.mxu0 0.0
    %379 = vmatprep.subr.mxu0 0.0
    %380 = vmatpush2.msra.mxu0 0.0
    %381 = vmatprep.subr.mxu0 0.0
    %382 = vmatpush2.msra.mxu0 0.0
    %383 = vmatprep.subr.mxu0 0.0
    %384 = vmatpush2.msra.mxu0 0.0
    %385 = vmatprep.subr.mxu0 0.0
    %386 = vmatpush2.msra.mxu0 0.0
    %387 = vmatprep.mubr.f32.mxu0 0.0
    %388 = vmatmul.mubr.f32.gmra.mxu0 %v321
    %v389 = vpop.f32.mrf.mxu0
    %v390 = vadd.f32 %v318, %v389
    %v391 = vpop.f32.mrf.mxu0
    %392 = vdwg.mxu0
    %v393 = vmax.f32 %v390, 0.0
    %v394 = vld [vmem:[%s7] sm:$0xff]
    %v395 = vld [vmem:[%s7 + $0x8] sm:$0xff]
    %v396 = vld [vmem:[%s7 + $0x10] sm:$0xff]
    %v397 = vld [vmem:[%s7 + $0x18] sm:$0xff]
    %v398 = vld [vmem:[%s7 + $0x20] sm:$0xff]
    %v399 = vld [vmem:[%s7 + $0x28] sm:$0xff]
    %v400 = vld [vmem:[%s7 + $0x30] sm:$0xff]
    %v401 = vld [vmem:[%s7 + $0x38] sm:$0xff]
    %v402 = vld [vmem:[%s7 + $0x40] sm:$0xff]
    %v403 = vld [vmem:[%s7 + $0x48] sm:$0xff]
    %v404 = vld [vmem:[%s7 + $0x50] sm:$0xff]
    %v405 = vld [vmem:[%s7 + $0x58] sm:$0xff]
    %v406 = vld [vmem:[%s8] sm:$0x1]
    %v408 = vlaneseq
    %v409 = vshrl.u32 %v408, 7
    %v410 = vsub.s32 0, %v409
    %v411 = vrot.slane %v406, %v410
    %v414 = vsel %vm224, %v393, 0
    %416 = vmatprep.subr.mxu0 0.0
    %417 = vmatpush1.msra.mxu0 0.0
    %418 = vmatprep.subr.mxu0 0.0
    %419 = vmatpush1.msra.mxu0 0.0
    %420 = vmatprep.subr.mxu0 0.0
    %421 = vmatpush1.msra.mxu0 0.0
    %422 = vmatprep.subr.mxu0 0.0
    %423 = vmatpush1.msra.mxu0 0.0
    %424 = vmatprep.subr.mxu0 0.0
    %425 = vmatpush1.msra.mxu0 %v405
    %426 = vmatprep.subr.mxu0 0.0
    %427 = vmatpush1.msra.mxu0 %v404
    %428 = vmatprep.subr.mxu0 0.0
    %429 = vmatpush1.msra.mxu0 %v403
    %430 = vmatprep.subr.mxu0 0.0
    %431 = vmatpush1.msra.mxu0 %v402
    %432 = vmatprep.subr.mxu0 0.0
    %433 = vmatpush1.msra.mxu0 %v401
    %434 = vmatprep.subr.mxu0 0.0
    %435 = vmatpush1.msra.mxu0 %v400
    %436 = vmatprep.subr.mxu0 0.0
    %437 = vmatpush1.msra.mxu0 %v399
    %438 = vmatprep.subr.mxu0 0.0
    %439 = vmatpush1.msra.mxu0 %v398
    %440 = vmatprep.subr.mxu0 0.0
    %441 = vmatpush1.msra.mxu0 %v397
    %442 = vmatprep.subr.mxu0 0.0
    %443 = vmatpush1.msra.mxu0 %v396
    %444 = vmatprep.subr.mxu0 0.0
    %445 = vmatpush1.msra.mxu0 %v395
    %446 = vmatprep.subr.mxu0 0.0
    %447 = vmatpush1.msra.mxu0 %v394
    %448 = vmatprep.subr.mxu0 0.0
    %449 = vmatpush2.msra.mxu0 0.0
    %450 = vmatprep.subr.mxu0 0.0
    %451 = vmatpush2.msra.mxu0 0.0
    %452 = vmatprep.subr.mxu0 0.0
    %453 = vmatpush2.msra.mxu0 0.0
    %454 = vmatprep.subr.mxu0 0.0
    %455 = vmatpush2.msra.mxu0 0.0
    %456 = vmatprep.subr.mxu0 0.0
    %457 = vmatpush2.msra.mxu0 0.0
    %458 = vmatprep.subr.mxu0 0.0
    %459 = vmatpush2.msra.mxu0 0.0
    %460 = vmatprep.subr.mxu0 0.0
    %461 = vmatpush2.msra.mxu0 0.0
    %462 = vmatprep.subr.mxu0 0.0
    %463 = vmatpush2.msra.mxu0 0.0
    %464 = vmatprep.subr.mxu0 0.0
    %465 = vmatpush2.msra.mxu0 0.0
    %466 = vmatprep.subr.mxu0 0.0
    %467 = vmatpush2.msra.mxu0 0.0
    %468 = vmatprep.subr.mxu0 0.0
    %469 = vmatpush2.msra.mxu0 0.0
    %470 = vmatprep.subr.mxu0 0.0
    %471 = vmatpush2.msra.mxu0 0.0
    %472 = vmatprep.subr.mxu0 0.0
    %473 = vmatpush2.msra.mxu0 0.0
    %474 = vmatprep.subr.mxu0 0.0
    %475 = vmatpush2.msra.mxu0 0.0
    %476 = vmatprep.subr.mxu0 0.0
    %477 = vmatpush2.msra.mxu0 0.0
    %478 = vmatprep.subr.mxu0 0.0
    %479 = vmatpush2.msra.mxu0 0.0
    %480 = vmatprep.mubr.f32.mxu0 0.0
    %481 = vmatmul.mubr.f32.gmra.mxu0 %v414
    %v482 = vpop.f32.mrf.mxu0
    %v483 = vadd.f32 %v411, %v482
    %v484 = vpop.f32.mrf.mxu0
    %485 = vdwg.mxu0
    %v486 = vlaneseq
    %v487 = vand.u32 %v486, 127
    %vm488 = vcmp.ge.s32.totalorder %v487, 0
    %vm489 = vcmp.lt.s32.totalorder %v487, 10
    %vm490 = vmand %vm488, %vm489
    %v491 = vsel %vm490, %v483, -1e+30
    %vm492 = vcmask 240640
    %v493 = vsel %vm492, %v491, -inf
    %494 = vmax.xlane.f32.xlu0 %v493
    %v495 = vpop.xlane.xlu0 %494
    %v496 = vsub.f32 %v491, %v495
    %v497 = vmul.f32 %v496, 1.442695
    %v498 = vpow.pop %v497
    %v499 = vsel %vm490, %v498, 0.0
    %v500 = vsel %vm492, %v499, 0.0
    %501 = vadd.xlane.f32.xlu0 %v500
    %v502 = vpop.xlane.xlu0 %501
    %v503 = vlog2.pop %v502
    %v504 = vmul.f32 %v503, 0.6931472
    %v505 = vadd.f32 %v495, %v504
    %v506 = vsel %vm490, %v505, 0.0
    %v507 = vadd.f32 %v506, 0.0
    %vm508 = vcmp.ge.s32.totalorder %v487, 10
    %vm509 = vcmp.lt.s32.totalorder %v487, 20
    %vm510 = vmand %vm508, %vm509
    %v511 = vsel %vm510, %v483, -1e+30
    %v512 = vsel %vm492, %v511, -inf
    %513 = vmax.xlane.f32.xlu0 %v512
    %v514 = vpop.xlane.xlu0 %513
    %v515 = vsub.f32 %v511, %v514
    %v516 = vmul.f32 %v515, 1.442695
    %v517 = vpow.pop %v516
    %v518 = vsel %vm510, %v517, 0.0
    %v519 = vsel %vm492, %v518, 0.0
    %520 = vadd.xlane.f32.xlu0 %v519
    %v521 = vpop.xlane.xlu0 %520
    %v522 = vlog2.pop %v521
    %v523 = vmul.f32 %v522, 0.6931472
    %v524 = vadd.f32 %v514, %v523
    %v525 = vsel %vm510, %v524, 0.0
    %v526 = vadd.f32 %v507, %v525
    %vm527 = vcmp.ge.s32.totalorder %v487, 20
    %vm528 = vcmp.lt.s32.totalorder %v487, 30
    %vm529 = vmand %vm527, %vm528
    %v530 = vsel %vm529, %v483, -1e+30
    %v531 = vsel %vm492, %v530, -inf
    %532 = vmax.xlane.f32.xlu0 %v531
    %v533 = vpop.xlane.xlu0 %532
    %v534 = vsub.f32 %v530, %v533
    %v535 = vmul.f32 %v534, 1.442695
    %v536 = vpow.pop %v535
    %v537 = vsel %vm529, %v536, 0.0
    %v538 = vsel %vm492, %v537, 0.0
    %539 = vadd.xlane.f32.xlu0 %v538
    %v540 = vpop.xlane.xlu0 %539
    %v541 = vlog2.pop %v540
    %v542 = vmul.f32 %v541, 0.6931472
    %v543 = vadd.f32 %v533, %v542
    %v544 = vsel %vm529, %v543, 0.0
    %v545 = vadd.f32 %v526, %v544
    %v546 = vsub.f32 %v483, %v545
    %v547 = vld [vmem:[%s2] sm:$0xf]
    %v548 = vmul.f32 %v546, %v547
    %v549 = vsel %vm492, %v548, 0.0
    %550 = vadd.xlane.f32.xlu0 %v549
    %v551 = vpop.xlane.xlu0 %550
    %v552 = vmul.f32 %v551, -0.33333334
    %v553 = vld [vmem:[#allocation7] sm:$0xff]
    %v554 = vld [vmem:[#allocation7 + $0x8] sm:$0xff]
    %v555 = vld [vmem:[#allocation7 + $0x10] sm:$0xff]
    %v556 = vld [vmem:[#allocation7 + $0x18] sm:$0xff]
    %v557 = vld [vmem:[#allocation7 + $0x20] sm:$0xf]
    %v558 = vld [vmem:[#allocation8] sm:$0xff]
    %v559 = vld [vmem:[#allocation8 + $0x8] sm:$0xff]
    %v560 = vld [vmem:[#allocation8 + $0x10] sm:$0xff]
    %v561 = vld [vmem:[#allocation8 + $0x18] sm:$0xff]
    %v562 = vld [vmem:[#allocation8 + $0x20] sm:$0xf]
    %v563 = vld [vmem:[%s9] sm:$0xff]
    %v564 = vld [vmem:[%s9 + $0x8] sm:$0xff]
    %v565 = vld [vmem:[%s9 + $0x10] sm:$0xff]
    %v566 = vld [vmem:[%s9 + $0x18] sm:$0xff]
    %v567 = vld [vmem:[%s9 + $0x20] sm:$0xf]
    %v568 = vmul.f32 %v563, %v563
    %v569 = vmul.f32 %v564, %v564
    %v570 = vmul.f32 %v565, %v565
    %v571 = vmul.f32 %v566, %v566
    %v572 = vmul.f32 %v567, %v567
    %v573 = vmul.f32 %v568, 0.5
    %v574 = vmul.f32 %v569, 0.5
    %v575 = vmul.f32 %v570, 0.5
    %v576 = vmul.f32 %v571, 0.5
    %v577 = vmul.f32 %v572, 0.5
    %v578 = vsub.f32 -0.9189385, %v573
    %v579 = vsub.f32 -0.9189385, %v574
    %v580 = vsub.f32 -0.9189385, %v575
    %v581 = vsub.f32 -0.9189385, %v576
    %v582 = vsub.f32 -0.9189385, %v577
    %v583 = vmul.f32 %v568, -81376.9
    %v584 = vmul.f32 %v569, -81376.9
    %v585 = vmul.f32 %v570, -81376.9
    %v586 = vmul.f32 %v571, -81376.9
    %v587 = vmul.f32 %v572, -81376.9
    %v588 = vmul.f32 %v583, 1.442695
    %v589 = vpow.pop %v588
    %v590 = vmul.f32 %v584, 1.442695
    %v591 = vpow.pop %v590
    %v592 = vmul.f32 %v585, 1.442695
    %v593 = vpow.pop %v592
    %v594 = vmul.f32 %v586, 1.442695
    %v595 = vpow.pop %v594
    %v596 = vmul.f32 %v587, 1.442695
    %v597 = vpow.pop %v596
    %v598 = vmul.f32 %v589, 201.7144
    %v599 = vmul.f32 %v591, 201.7144
    %v600 = vmul.f32 %v593, 201.7144
    %v601 = vmul.f32 %v595, 201.7144
    %v602 = vmul.f32 %v597, 201.7144
    %v603 = vadd.f32 %v598, 0.5
    %v604 = vadd.f32 %v599, 0.5
    %v605 = vadd.f32 %v600, 0.5
    %v606 = vadd.f32 %v601, 0.5
    %v607 = vadd.f32 %v602, 0.5
    %v608 = vlog2.pop %v603
    %v609 = vmul.f32 %v608, 0.6931472
    %v610 = vlog2.pop %v604
    %v611 = vmul.f32 %v610, 0.6931472
    %v612 = vlog2.pop %v605
    %v613 = vmul.f32 %v612, 0.6931472
    %v614 = vlog2.pop %v606
    %v615 = vmul.f32 %v614, 0.6931472
    %v616 = vlog2.pop %v607
    %v617 = vmul.f32 %v616, 0.6931472
    %v618 = vadd.f32 %v578, %v609
    %v619 = vadd.f32 %v579, %v611
    %v620 = vadd.f32 %v580, %v613
    %v621 = vadd.f32 %v581, %v615
    %v622 = vadd.f32 %v582, %v617
    %v623 = vsub.f32 %v563, %v553
    %v624 = vsub.f32 %v564, %v554
    %v625 = vsub.f32 %v565, %v555
    %v626 = vsub.f32 %v566, %v556
    %v627 = vsub.f32 %v567, %v557
    %v628 = vmul.f32 %v623, %v623
    %v629 = vmul.f32 %v624, %v624
    %v630 = vmul.f32 %v625, %v625
    %v631 = vmul.f32 %v626, %v626
    %v632 = vmul.f32 %v627, %v627
    %v633 = vsub.f32 0.0, %v628
    %v634 = vsub.f32 0.0, %v629
    %v635 = vsub.f32 0.0, %v630
    %v636 = vsub.f32 0.0, %v631
    %v637 = vsub.f32 0.0, %v632
    %v638 = vmul.f32 %v633, %v558
    %v639 = vmul.f32 %v634, %v559
    %v640 = vmul.f32 %v635, %v560
    %v641 = vmul.f32 %v636, %v561
    %v642 = vmul.f32 %v637, %v562
    %v643 = vsub.f32 %v638, %v618
    %v644 = vsub.f32 %v639, %v619
    %v645 = vsub.f32 %v640, %v620
    %v646 = vsub.f32 %v641, %v621
    %v647 = vsub.f32 %v642, %v622
    %v648 = vadd.f32 %v643, 0.0
    %v649 = vadd.f32 %v644, 0.0
    %v650 = vadd.f32 %v645, 0.0
    %v651 = vadd.f32 %v646, 0.0
    %v652 = vadd.f32 %v647, 0.0
    %s653 = scalar_lea.vmem %s9, 40
    %v654 = vld [vmem:[%s653] sm:$0xff]
    %v655 = vld [vmem:[%s653 + $0x8] sm:$0xff]
    %v656 = vld [vmem:[%s653 + $0x10] sm:$0xff]
    %v657 = vld [vmem:[%s653 + $0x18] sm:$0xff]
    %v658 = vld [vmem:[%s653 + $0x20] sm:$0xf]
    %v659 = vmul.f32 %v654, %v654
    %v660 = vmul.f32 %v655, %v655
    %v661 = vmul.f32 %v656, %v656
    %v662 = vmul.f32 %v657, %v657
    %v663 = vmul.f32 %v658, %v658
    %v664 = vmul.f32 %v659, 0.5
    %v665 = vmul.f32 %v660, 0.5
    %v666 = vmul.f32 %v661, 0.5
    %v667 = vmul.f32 %v662, 0.5
    %v668 = vmul.f32 %v663, 0.5
    %v669 = vsub.f32 -0.9189385, %v664
    %v670 = vsub.f32 -0.9189385, %v665
    %v671 = vsub.f32 -0.9189385, %v666
    %v672 = vsub.f32 -0.9189385, %v667
    %v673 = vsub.f32 -0.9189385, %v668
    %v674 = vmul.f32 %v659, -81376.9
    %v675 = vmul.f32 %v660, -81376.9
    %v676 = vmul.f32 %v661, -81376.9
    %v677 = vmul.f32 %v662, -81376.9
    %v678 = vmul.f32 %v663, -81376.9
    %v679 = vmul.f32 %v674, 1.442695
    %v680 = vpow.pop %v679
    %v681 = vmul.f32 %v675, 1.442695
    %v682 = vpow.pop %v681
    %v683 = vmul.f32 %v676, 1.442695
    %v684 = vpow.pop %v683
    %v685 = vmul.f32 %v677, 1.442695
    %v686 = vpow.pop %v685
    %v687 = vmul.f32 %v678, 1.442695
    %v688 = vpow.pop %v687
    %v689 = vmul.f32 %v680, 201.7144
    %v690 = vmul.f32 %v682, 201.7144
    %v691 = vmul.f32 %v684, 201.7144
    %v692 = vmul.f32 %v686, 201.7144
    %v693 = vmul.f32 %v688, 201.7144
    %v694 = vadd.f32 %v689, 0.5
    %v695 = vadd.f32 %v690, 0.5
    %v696 = vadd.f32 %v691, 0.5
    %v697 = vadd.f32 %v692, 0.5
    %v698 = vadd.f32 %v693, 0.5
    %v699 = vlog2.pop %v694
    %v700 = vmul.f32 %v699, 0.6931472
    %v701 = vlog2.pop %v695
    %v702 = vmul.f32 %v701, 0.6931472
    %v703 = vlog2.pop %v696
    %v704 = vmul.f32 %v703, 0.6931472
    %v705 = vlog2.pop %v697
    %v706 = vmul.f32 %v705, 0.6931472
    %v707 = vlog2.pop %v698
    %v708 = vmul.f32 %v707, 0.6931472
    %v709 = vadd.f32 %v669, %v700
    %v710 = vadd.f32 %v670, %v702
    %v711 = vadd.f32 %v671, %v704
    %v712 = vadd.f32 %v672, %v706
    %v713 = vadd.f32 %v673, %v708
    %v714 = vsub.f32 %v654, %v553
    %v715 = vsub.f32 %v655, %v554
    %v716 = vsub.f32 %v656, %v555
    %v717 = vsub.f32 %v657, %v556
    %v718 = vsub.f32 %v658, %v557
    %v719 = vmul.f32 %v714, %v714
    %v720 = vmul.f32 %v715, %v715
    %v721 = vmul.f32 %v716, %v716
    %v722 = vmul.f32 %v717, %v717
    %v723 = vmul.f32 %v718, %v718
    %v724 = vsub.f32 0.0, %v719
    %v725 = vsub.f32 0.0, %v720
    %v726 = vsub.f32 0.0, %v721
    %v727 = vsub.f32 0.0, %v722
    %v728 = vsub.f32 0.0, %v723
    %v729 = vmul.f32 %v724, %v558
    %v730 = vmul.f32 %v725, %v559
    %v731 = vmul.f32 %v726, %v560
    %v732 = vmul.f32 %v727, %v561
    %v733 = vmul.f32 %v728, %v562
    %v734 = vsub.f32 %v729, %v709
    %v735 = vsub.f32 %v730, %v710
    %v736 = vsub.f32 %v731, %v711
    %v737 = vsub.f32 %v732, %v712
    %v738 = vsub.f32 %v733, %v713
    %v739 = vadd.f32 %v648, %v734
    %v740 = vadd.f32 %v649, %v735
    %v741 = vadd.f32 %v650, %v736
    %v742 = vadd.f32 %v651, %v737
    %v743 = vadd.f32 %v652, %v738
    %s744 = scalar_lea.vmem %s9, 80
    %v745 = vld [vmem:[%s744] sm:$0xff]
    %v746 = vld [vmem:[%s744 + $0x8] sm:$0xff]
    %v747 = vld [vmem:[%s744 + $0x10] sm:$0xff]
    %v748 = vld [vmem:[%s744 + $0x18] sm:$0xff]
    %v749 = vld [vmem:[%s744 + $0x20] sm:$0xf]
    %v750 = vmul.f32 %v745, %v745
    %v751 = vmul.f32 %v746, %v746
    %v752 = vmul.f32 %v747, %v747
    %v753 = vmul.f32 %v748, %v748
    %v754 = vmul.f32 %v749, %v749
    %v755 = vmul.f32 %v750, 0.5
    %v756 = vmul.f32 %v751, 0.5
    %v757 = vmul.f32 %v752, 0.5
    %v758 = vmul.f32 %v753, 0.5
    %v759 = vmul.f32 %v754, 0.5
    %v760 = vsub.f32 -0.9189385, %v755
    %v761 = vsub.f32 -0.9189385, %v756
    %v762 = vsub.f32 -0.9189385, %v757
    %v763 = vsub.f32 -0.9189385, %v758
    %v764 = vsub.f32 -0.9189385, %v759
    %v765 = vmul.f32 %v750, -81376.9
    %v766 = vmul.f32 %v751, -81376.9
    %v767 = vmul.f32 %v752, -81376.9
    %v768 = vmul.f32 %v753, -81376.9
    %v769 = vmul.f32 %v754, -81376.9
    %v770 = vmul.f32 %v765, 1.442695
    %v771 = vpow.pop %v770
    %v772 = vmul.f32 %v766, 1.442695
    %v773 = vpow.pop %v772
    %v774 = vmul.f32 %v767, 1.442695
    %v775 = vpow.pop %v774
    %v776 = vmul.f32 %v768, 1.442695
    %v777 = vpow.pop %v776
    %v778 = vmul.f32 %v769, 1.442695
    %v779 = vpow.pop %v778
    %v780 = vmul.f32 %v771, 201.7144
    %v781 = vmul.f32 %v773, 201.7144
    %v782 = vmul.f32 %v775, 201.7144
    %v783 = vmul.f32 %v777, 201.7144
    %v784 = vmul.f32 %v779, 201.7144
    %v785 = vadd.f32 %v780, 0.5
    %v786 = vadd.f32 %v781, 0.5
    %v787 = vadd.f32 %v782, 0.5
    %v788 = vadd.f32 %v783, 0.5
    %v789 = vadd.f32 %v784, 0.5
    %v790 = vlog2.pop %v785
    %v791 = vmul.f32 %v790, 0.6931472
    %v792 = vlog2.pop %v786
    %v793 = vmul.f32 %v792, 0.6931472
    %v794 = vlog2.pop %v787
    %v795 = vmul.f32 %v794, 0.6931472
    %v796 = vlog2.pop %v788
    %v797 = vmul.f32 %v796, 0.6931472
    %v798 = vlog2.pop %v789
    %v799 = vmul.f32 %v798, 0.6931472
    %v800 = vadd.f32 %v760, %v791
    %v801 = vadd.f32 %v761, %v793
    %v802 = vadd.f32 %v762, %v795
    %v803 = vadd.f32 %v763, %v797
    %v804 = vadd.f32 %v764, %v799
    %v805 = vsub.f32 %v745, %v553
    %v806 = vsub.f32 %v746, %v554
    %v807 = vsub.f32 %v747, %v555
    %v808 = vsub.f32 %v748, %v556
    %v809 = vsub.f32 %v749, %v557
    %v810 = vmul.f32 %v805, %v805
    %v811 = vmul.f32 %v806, %v806
    %v812 = vmul.f32 %v807, %v807
    %v813 = vmul.f32 %v808, %v808
    %v814 = vmul.f32 %v809, %v809
    %v815 = vsub.f32 0.0, %v810
    %v816 = vsub.f32 0.0, %v811
    %v817 = vsub.f32 0.0, %v812
    %v818 = vsub.f32 0.0, %v813
    %v819 = vsub.f32 0.0, %v814
    %v820 = vmul.f32 %v815, %v558
    %v821 = vmul.f32 %v816, %v559
    %v822 = vmul.f32 %v817, %v560
    %v823 = vmul.f32 %v818, %v561
    %v824 = vmul.f32 %v819, %v562
    %v825 = vsub.f32 %v820, %v800
    %v826 = vsub.f32 %v821, %v801
    %v827 = vsub.f32 %v822, %v802
    %v828 = vsub.f32 %v823, %v803
    %v829 = vsub.f32 %v824, %v804
    %v830 = vadd.f32 %v739, %v825
    %v831 = vadd.f32 %v740, %v826
    %v832 = vadd.f32 %v741, %v827
    %v833 = vadd.f32 %v742, %v828
    %v834 = vadd.f32 %v743, %v829
    %v835 = vadd.f32 %v830, %v831
    %v836 = vadd.f32 %v835, %v832
    %v837 = vadd.f32 %v836, %v833
    %vm838 = vcmask 1043456
    %v839 = vsel %vm838, %v834, 0.0
    %v840 = vadd.f32 %v837, %v839
    %841 = vadd.xlane.f32.xlu0 %v840
    %v842 = vpop.xlane.xlu0 %841
    %v843 = vrot.slane %v842, 4
    %v844 = vadd.f32 %v842, %v843
    %v845 = vrot.slane %v844, 2
    %v846 = vadd.f32 %v844, %v845
    %v847 = vrot.slane %v846, 1
    %v848 = vadd.f32 %v846, %v847
    %s849 = vtos %v848
    %s850 = smul.f32 %s849, 0.33333334
    %s851 = sld [smem:[#allocation2]]
    %s852 = sadd.f32 %s850, %s851
    %s853 = sadd.f32 %s852, 377.57355
    %v854 = vstv %s853
    %v855 = vadd.f32 %v552, %v854
    %vm856 = vcmask 3072
    %857 = vst.msk [vmem:[%s12] sm:$0xf] %vm856, %v855
    // Predicated region
    $region66: #{bbb_loss.1} parent=1 // pred_check
      _
    $region67: #{bbb_loss.1} parent=1 // pred_check_branch
      %859 = sbr.rel (0) target = $region69
    $region68: #{bbb_loss.1} parent=1 // pred_region
      _
    $region69: #{bbb_loss.1} parent=1 // pred_fallthru
      _
    // Predicated region
    $region70: #{bbb_loss.1} parent=1 // pred_check
      _
    $region71: #{bbb_loss.1} parent=1 // pred_check_branch
      %861 = sbr.rel (0) target = $region73
    $region72: #{bbb_loss.1} parent=1 // pred_region
      _
    $region73: #{bbb_loss.1} parent=1 // pred_fallthru
      _
    %862 = vsyncpa [#allocation4], 1
    %863 = vsyncpa [#allocation6], 1
    %864 = vsyncpa [#allocation9], 1

</llo_original>
